<compile_context>
chip_gen: v7x
topology: tpu7x:2x2x1
jax: 0.10.0
libtpu: 0.0.40
codegen_flags: <defaults>
</compile_context>

<pallas_src>
import functools

import jax
import jax.numpy as jnp
from jax.experimental import pallas as pl
from jax.experimental.pallas import tpu as pltpu


def _gat_kernel(x_ref, adj_ref, waug_ref, out_ref, *, alpha, concat):
    # x_ref:   (1, S*N, Fin)
    # adj_ref: (1, S, N, N)
    # waug_ref:(Fin, Fout + 2)        columns = [W | W@a1 | W@a2]
    # out_ref: (1, S, N*Fout)
    S = adj_ref.shape[1]
    N = adj_ref.shape[2]
    Fout = out_ref.shape[2] // N

    x = x_ref[0]                       # (S*N, Fin)
    w_aug = waug_ref[...]              # (Fin, Fout+2)

    # One MXU matmul gives h and both attention projections at once (f32 accumulation).
    h_aug = jnp.dot(x, w_aug, preferred_element_type=jnp.float32)      # (S*N, Fout+2)
    h_aug = h_aug.reshape(S, N, Fout + 2)                              # split leading dim only

    h = h_aug[:, :, :Fout]                                             # (S, N, Fout)
    # Degenerate last-axis reductions = cheap squeeze of the projection columns.
    f1 = jnp.sum(h_aug[:, :, Fout:Fout + 1], axis=-1)                  # (S, N)  a1 . h
    f2 = jnp.sum(h_aug[:, :, Fout + 1:Fout + 2], axis=-1)              # (S, N)  a2 . h

    # e[s,i,j] = leakyrelu(f1[s,i] + f2[s,j])
    att = f1[:, :, None] + f2[:, None, :]                              # (S, N, N)
    att = jnp.where(att > 0, att, alpha * att)                         # LeakyReLU(alpha)

    adj = adj_ref[0]                                                   # (S, N, N)
    att = jnp.where(adj > 0, att, -9.0e15)                             # scalar fill value

    # softmax over dim=1 of the original (B,S,N,N) tensor == axis 0 here (the seq axis)
    m = jnp.max(att, axis=0, keepdims=True)
    att = jnp.exp(att - m)                                             # EUP
    denom = jnp.sum(att, axis=0, keepdims=True)                        # (1, N, N)
    inv = pl.reciprocal(denom, approx=True)                            # EUP, off the VALU
    inv = inv * (2.0 - denom * inv)                                    # 1 Newton step on tiny array
    att = att * inv

    # TODO(synk): F.dropout skipped (equivalent to training=False / eval mode).

    # h'[s,i,f] = sum_j att[s,i,j] * h[s,j,f]
    if N <= 16:
        # N is tiny: a VPU broadcast-multiply unrolled over j beats S tiny MXU matmuls.
        hp3 = att[:, :, 0:1] * h[:, 0:1, :]                            # (S,N,1)*(S,1,Fout)
        for j in range(1, N):
            hp3 = hp3 + att[:, :, j:j + 1] * h[:, j:j + 1, :]          # (S, N, Fout)
        # Lane-dense flatten (S,N,Fout) -> (S, N*Fout) via slice + lane concat
        # (avoids a minor-dims reshape).
        hp = jnp.concatenate([hp3[:, i:i + 1, :] for i in range(N)], axis=2)  # (S,1,N*Fout)
        hp = hp.reshape(S, N * Fout)                                   # collapse unit dim
    else:
        hp3 = jax.lax.dot_general(att, h, (((2,), (1,)), ((0,), (0,))),
                                  preferred_element_type=jnp.float32)  # (S, N, Fout)
        hp = hp3.reshape(S, N * Fout)

    if concat:
        # ELU without overflow: exp only sees non-positive arguments.
        hp = jnp.where(hp > 0, hp, jnp.exp(jnp.minimum(hp, 0.0)) - 1.0)

    out_ref[0] = hp.astype(out_ref.dtype)


def _round_up(v, m):
    return (v + m - 1) // m * m


def _vmem_block_bytes(shape, itemsize=4):
    """Rough padded VMEM footprint of one block ((8,128) tiling on the minor dims)."""
    shape = tuple(int(d) for d in shape)
    if len(shape) == 1:
        return _round_up(shape[0], 128) * 8 * itemsize
    lead = 1
    for d in shape[:-2]:
        lead *= d
    return lead * _round_up(shape[-2], 8) * _round_up(shape[-1], 128) * itemsize


def gat_layer(inputs, adj, W, a, *, alpha=0.2, concat=True, matmul_dtype=None):
    """inputs: (B,S,N,Fin), adj: (B,S,N,N), W: (Fin,Fout), a: (2*Fout,1).

    matmul_dtype: optionally jnp.bfloat16 to halve DMA/VMEM for the feature matmul on
    v6e/v7x (accumulation stays f32). Default None keeps full f32 numerics.
    """
    B, S, N, Fin = inputs.shape
    Fout = W.shape[1]

    # Fold the attention projections into the feature matmul: W_aug = [W | W@a1 | W@a2].
    a1 = a[:Fout, 0]
    a2 = a[Fout:, 0]
    w_aug = jnp.concatenate([W, (W @ a1)[:, None], (W @ a2)[:, None]], axis=1)  # (Fin, Fout+2)

    # Wrapper-side layout plumbing (free XLA reshapes): denser input block, lane-dense output.
    x_flat = inputs.reshape(B, S * N, Fin)
    if matmul_dtype is not None:
        x_flat = x_flat.astype(matmul_dtype)
        w_aug = w_aug.astype(matmul_dtype)

    itemsize = jnp.dtype(inputs.dtype).itemsize
    est = (
        2 * (_vmem_block_bytes((1, S * N, Fin), itemsize)        # double-buffered inputs/outputs
             + _vmem_block_bytes((1, S, N, N), 4)
             + _vmem_block_bytes((1, S, N * Fout), itemsize))
        + 2 * _vmem_block_bytes((Fin, Fout + 2), itemsize)
        + 2 * _vmem_block_bytes((S * N, Fout + 2), 4)            # h_aug
        + 6 * _vmem_block_bytes((S, N, N), 4)                    # e / att / exp temporaries
        + 2 * _vmem_block_bytes((S, N * Fout), 4)                # hp
    )
    try:
        info = pltpu.get_tpu_info()
        vmem_cap = int(getattr(info, "vmem_capacity_bytes", 0)) or 64 * 1024 * 1024
    except Exception:  # pragma: no cover - conservative fallback
        vmem_cap = 64 * 1024 * 1024
    vmem_limit = int(min(max(4 * est, 32 * 1024 * 1024), int(0.9 * vmem_cap)))
    # TODO(synk): for large S*N^2 (slab no longer fits VMEM), add a row-tile grid axis
    #             (B, cdiv(N, TN)) over the attention rows i — safe since softmax reduces over S.

    out_flat = pl.pallas_call(
        functools.partial(_gat_kernel, alpha=alpha, concat=concat),
        out_shape=jax.ShapeDtypeStruct((B, S, N * Fout), inputs.dtype),
        grid=(B,),
        in_specs=[
            pl.BlockSpec((1, S * N, Fin), lambda b: (b, 0, 0)),
            pl.BlockSpec((1, S, N, N), lambda b: (b, 0, 0, 0)),
            pl.BlockSpec((Fin, Fout + 2), lambda b: (0, 0)),
        ],
        out_specs=pl.BlockSpec((1, S, N * Fout), lambda b: (b, 0, 0)),
        compiler_params=pltpu.CompilerParams(
            dimension_semantics=("parallel",),
            vmem_limit_bytes=vmem_limit,
        ),
    )(x_flat, adj, w_aug)

    h_prime = out_flat.reshape(B, S, N, Fout)
    if concat:
        return h_prime, adj
    return h_prime


def _gat_reference(inputs, adj, W, a, *, alpha=0.2, concat=True):
    """Pure-JAX reference mirroring the PyTorch forward."""
    h = jnp.einsum("bsnf,fg->bsng", inputs, W)
    Fout = W.shape[1]
    a1 = a[:Fout, 0]
    a2 = a[Fout:, 0]
    f1 = jnp.einsum("bsnf,f->bsn", h, a1)
    f2 = jnp.einsum("bsnf,f->bsn", h, a2)
    e = f1[..., :, None] + f2[..., None, :]
    e = jnp.where(e > 0, e, alpha * e)
    att = jnp.where(adj > 0, e, jnp.full_like(e, -9.0e15))
    att = jax.nn.softmax(att, axis=1)          # dim=1 (seq axis), as in the module
    hp = jnp.einsum("bsij,bsjf->bsif", att, h)
    if concat:
        return jax.nn.elu(hp), adj
    return hp


if __name__ == "__main__":
    B, S, N, Fin, Fout = 2, 8, 4, 8, 8
    alpha, concat = 0.2, True

    key = jax.random.PRNGKey(0)
    kx, ka, kw, kav = jax.random.split(key, 4)

    inputs = jax.random.normal(kx, (B, S, N, Fin), dtype=jnp.float32)
    adj = (jax.random.uniform(ka, (B, S, N, N)) > 0.4).astype(jnp.float32)

    # Deterministic xavier_normal-like init (gain=1.414), synthetic weights.
    W = jax.random.normal(kw, (Fin, Fout), dtype=jnp.float32) * (
        1.414 * (2.0 / (Fin + Fout)) ** 0.5)
    a = jax.random.normal(kav, (2 * Fout, 1), dtype=jnp.float32) * (
        1.414 * (2.0 / (2 * Fout + 1)) ** 0.5)

    out, adj_out = gat_layer(inputs, adj, W, a, alpha=alpha, concat=concat)
    out = jax.block_until_ready(out)

    ref, _ = _gat_reference(inputs, adj, W, a, alpha=alpha, concat=concat)
    assert out.shape == (B, S, N, Fout)
    max_err = float(jnp.max(jnp.abs(out - ref)))
    assert jnp.allclose(out, ref, atol=1e-3, rtol=1e-3), f"mismatch vs reference: {max_err}"

    print("KERNEL_OK")
</pallas_src>

<mosaic_0001>
module attributes {stable_mosaic.version = 11 : i64} {
  func.func @_gat_kernel(%arg0: i32, %arg1: memref<1x32x8xf32, #tpu.memory_space<vmem>>, %arg2: memref<1x8x4x4xf32, #tpu.memory_space<vmem>>, %arg3: memref<8x10xf32, #tpu.memory_space<vmem>>, %arg4: memref<1x8x32xf32, #tpu.memory_space<vmem>>) attributes {dimension_semantics = [#tpu.dimension_semantics<parallel>], iteration_bounds = array<i64: 2>, scalar_prefetch = 0 : i64, scratch_operands = 0 : i64, tpu.core_type = #tpu.core_type<tc>, window_params = [{transform_indices = @transform_0, window_bounds = array<i64: 1, 32, 8>}, {transform_indices = @transform_1, window_bounds = array<i64: 1, 8, 4, 4>}, {pipeline_mode = #tpu.pipeline_mode<synchronous>, transform_indices = @transform_2, window_bounds = array<i64: 8, 10>}, {transform_indices = @transform_3, window_bounds = array<i64: 1, 8, 32>}]} {
    %c0 = arith.constant 0 : index
    %c0_0 = arith.constant 0 : index
    %c0_1 = arith.constant 0 : index
    %0 = vector.load %arg1[%c0, %c0_0, %c0_1] : memref<1x32x8xf32, #tpu.memory_space<vmem>>, vector<1x32x8xf32>
    %1 = vector.shape_cast %0 : vector<1x32x8xf32> to vector<32x8xf32>
    %c0_2 = arith.constant 0 : index
    %c0_3 = arith.constant 0 : index
    %2 = vector.load %arg3[%c0_2, %c0_3] : memref<8x10xf32, #tpu.memory_space<vmem>>, vector<8x10xf32>
    %cst = arith.constant dense<0.000000e+00> : vector<32x10xf32>
    %3 = tpu.matmul %1, %2, %cst {dimension_numbers = #tpu.dot_dimension_numbers<[1], [0], [0], [1], [0, 0, 1, 1], [], []>} : vector<32x8xf32>, vector<8x10xf32>, vector<32x10xf32> -> vector<32x10xf32>
    %4 = vector.shape_cast %3 : vector<32x10xf32> to vector<8x4x10xf32>
    %5 = vector.extract_strided_slice %4 {offsets = [0, 0, 0], sizes = [8, 4, 8], strides = [1, 1, 1]} : vector<8x4x10xf32> to vector<8x4x8xf32>
    %6 = vector.extract_strided_slice %4 {offsets = [0, 0, 8], sizes = [8, 4, 1], strides = [1, 1, 1]} : vector<8x4x10xf32> to vector<8x4x1xf32>
    %cst_4 = arith.constant dense<0.000000e+00> : vector<8x4xf32>
    %7 = vector.multi_reduction <add>, %6, %cst_4 [2] : vector<8x4x1xf32> to vector<8x4xf32>
    %8 = vector.extract_strided_slice %4 {offsets = [0, 0, 9], sizes = [8, 4, 1], strides = [1, 1, 1]} : vector<8x4x10xf32> to vector<8x4x1xf32>
    %cst_5 = arith.constant dense<0.000000e+00> : vector<8x4xf32>
    %9 = vector.multi_reduction <add>, %8, %cst_5 [2] : vector<8x4x1xf32> to vector<8x4xf32>
    %10 = vector.shape_cast %7 : vector<8x4xf32> to vector<8x4x1xf32>
    %11 = vector.shape_cast %9 : vector<8x4xf32> to vector<8x1x4xf32>
    %12 = vector.broadcast %10 : vector<8x4x1xf32> to vector<8x4x4xf32>
    %13 = vector.broadcast %11 : vector<8x1x4xf32> to vector<8x4x4xf32>
    %14 = arith.addf %12, %13 : vector<8x4x4xf32>
    %cst_6 = arith.constant 0.000000e+00 : f32
    %15 = vector.broadcast %cst_6 : f32 to vector<8x4x4xf32>
    %16 = arith.cmpf ogt, %14, %15 : vector<8x4x4xf32>
    %cst_7 = arith.constant 2.000000e-01 : f32
    %17 = vector.broadcast %cst_7 : f32 to vector<8x4x4xf32>
    %18 = arith.mulf %17, %14 : vector<8x4x4xf32>
    %19 = arith.select %16, %14, %18 : vector<8x4x4xi1>, vector<8x4x4xf32>
    %c0_8 = arith.constant 0 : index
    %c0_9 = arith.constant 0 : index
    %c0_10 = arith.constant 0 : index
    %c0_11 = arith.constant 0 : index
    %20 = vector.load %arg2[%c0_8, %c0_9, %c0_10, %c0_11] : memref<1x8x4x4xf32, #tpu.memory_space<vmem>>, vector<1x8x4x4xf32>
    %21 = vector.shape_cast %20 : vector<1x8x4x4xf32> to vector<8x4x4xf32>
    %cst_12 = arith.constant 0.000000e+00 : f32
    %22 = vector.broadcast %cst_12 : f32 to vector<8x4x4xf32>
    %23 = arith.cmpf ogt, %21, %22 : vector<8x4x4xf32>
    %cst_13 = arith.constant -9.000000e+15 : f32
    %24 = vector.broadcast %cst_13 : f32 to vector<8x4x4xf32>
    %25 = arith.select %23, %19, %24 : vector<8x4x4xi1>, vector<8x4x4xf32>
    %cst_14 = arith.constant dense<0xFF800000> : vector<4x4xf32>
    %26 = vector.multi_reduction <maximumf>, %25, %cst_14 [0] : vector<8x4x4xf32> to vector<4x4xf32>
    %27 = vector.shape_cast %26 : vector<4x4xf32> to vector<1x4x4xf32>
    %28 = vector.broadcast %27 : vector<1x4x4xf32> to vector<8x4x4xf32>
    %29 = arith.subf %25, %28 : vector<8x4x4xf32>
    %30 = math.exp %29 : vector<8x4x4xf32>
    %cst_15 = arith.constant dense<0.000000e+00> : vector<4x4xf32>
    %31 = vector.multi_reduction <add>, %30, %cst_15 [0] : vector<8x4x4xf32> to vector<4x4xf32>
    %32 = vector.shape_cast %31 : vector<4x4xf32> to vector<1x4x4xf32>
    %33 = tpu.reciprocal %32 {approx = true} : vector<1x4x4xf32> -> vector<1x4x4xf32>
    %34 = arith.mulf %32, %33 : vector<1x4x4xf32>
    %cst_16 = arith.constant 2.000000e+00 : f32
    %35 = vector.broadcast %cst_16 : f32 to vector<1x4x4xf32>
    %36 = arith.subf %35, %34 : vector<1x4x4xf32>
    %37 = arith.mulf %33, %36 : vector<1x4x4xf32>
    %38 = vector.broadcast %37 : vector<1x4x4xf32> to vector<8x4x4xf32>
    %39 = arith.mulf %30, %38 : vector<8x4x4xf32>
    %40 = vector.extract_strided_slice %39 {offsets = [0, 0, 0], sizes = [8, 4, 1], strides = [1, 1, 1]} : vector<8x4x4xf32> to vector<8x4x1xf32>
    %41 = vector.extract_strided_slice %5 {offsets = [0, 0, 0], sizes = [8, 1, 8], strides = [1, 1, 1]} : vector<8x4x8xf32> to vector<8x1x8xf32>
    %42 = vector.broadcast %40 : vector<8x4x1xf32> to vector<8x4x8xf32>
    %43 = vector.broadcast %41 : vector<8x1x8xf32> to vector<8x4x8xf32>
    %44 = arith.mulf %42, %43 : vector<8x4x8xf32>
    %45 = vector.extract_strided_slice %39 {offsets = [0, 0, 1], sizes = [8, 4, 1], strides = [1, 1, 1]} : vector<8x4x4xf32> to vector<8x4x1xf32>
    %46 = vector.extract_strided_slice %5 {offsets = [0, 1, 0], sizes = [8, 1, 8], strides = [1, 1, 1]} : vector<8x4x8xf32> to vector<8x1x8xf32>
    %47 = vector.broadcast %45 : vector<8x4x1xf32> to vector<8x4x8xf32>
    %48 = vector.broadcast %46 : vector<8x1x8xf32> to vector<8x4x8xf32>
    %49 = arith.mulf %47, %48 : vector<8x4x8xf32>
    %50 = arith.addf %44, %49 : vector<8x4x8xf32>
    %51 = vector.extract_strided_slice %39 {offsets = [0, 0, 2], sizes = [8, 4, 1], strides = [1, 1, 1]} : vector<8x4x4xf32> to vector<8x4x1xf32>
    %52 = vector.extract_strided_slice %5 {offsets = [0, 2, 0], sizes = [8, 1, 8], strides = [1, 1, 1]} : vector<8x4x8xf32> to vector<8x1x8xf32>
    %53 = vector.broadcast %51 : vector<8x4x1xf32> to vector<8x4x8xf32>
    %54 = vector.broadcast %52 : vector<8x1x8xf32> to vector<8x4x8xf32>
    %55 = arith.mulf %53, %54 : vector<8x4x8xf32>
    %56 = arith.addf %50, %55 : vector<8x4x8xf32>
    %57 = vector.extract_strided_slice %39 {offsets = [0, 0, 3], sizes = [8, 4, 1], strides = [1, 1, 1]} : vector<8x4x4xf32> to vector<8x4x1xf32>
    %58 = vector.extract_strided_slice %5 {offsets = [0, 3, 0], sizes = [8, 1, 8], strides = [1, 1, 1]} : vector<8x4x8xf32> to vector<8x1x8xf32>
    %59 = vector.broadcast %57 : vector<8x4x1xf32> to vector<8x4x8xf32>
    %60 = vector.broadcast %58 : vector<8x1x8xf32> to vector<8x4x8xf32>
    %61 = arith.mulf %59, %60 : vector<8x4x8xf32>
    %62 = arith.addf %56, %61 : vector<8x4x8xf32>
    %63 = vector.extract_strided_slice %62 {offsets = [0, 0, 0], sizes = [8, 1, 8], strides = [1, 1, 1]} : vector<8x4x8xf32> to vector<8x1x8xf32>
    %64 = vector.extract_strided_slice %62 {offsets = [0, 1, 0], sizes = [8, 1, 8], strides = [1, 1, 1]} : vector<8x4x8xf32> to vector<8x1x8xf32>
    %65 = vector.extract_strided_slice %62 {offsets = [0, 2, 0], sizes = [8, 1, 8], strides = [1, 1, 1]} : vector<8x4x8xf32> to vector<8x1x8xf32>
    %66 = vector.extract_strided_slice %62 {offsets = [0, 3, 0], sizes = [8, 1, 8], strides = [1, 1, 1]} : vector<8x4x8xf32> to vector<8x1x8xf32>
    %67 = tpu.concatenate %63, %64, %65, %66 in 2 : vector<8x1x8xf32>, vector<8x1x8xf32>, vector<8x1x8xf32>, vector<8x1x8xf32> -> vector<8x1x32xf32>
    %68 = vector.shape_cast %67 : vector<8x1x32xf32> to vector<8x32xf32>
    %cst_17 = arith.constant 0.000000e+00 : f32
    %69 = vector.broadcast %cst_17 : f32 to vector<8x32xf32>
    %70 = arith.cmpf ogt, %68, %69 : vector<8x32xf32>
    %cst_18 = arith.constant 0.000000e+00 : f32
    %71 = vector.broadcast %cst_18 : f32 to vector<8x32xf32>
    %72 = arith.minimumf %68, %71 : vector<8x32xf32>
    %73 = math.exp %72 : vector<8x32xf32>
    %cst_19 = arith.constant 1.000000e+00 : f32
    %74 = vector.broadcast %cst_19 : f32 to vector<8x32xf32>
    %75 = arith.subf %73, %74 : vector<8x32xf32>
    %76 = arith.select %70, %68, %75 : vector<8x32xi1>, vector<8x32xf32>
    %c0_20 = arith.constant 0 : index
    %c0_21 = arith.constant 0 : index
    %c0_22 = arith.constant 0 : index
    %77 = vector.load %arg4[%c0_20, %c0_21, %c0_22] : memref<1x8x32xf32, #tpu.memory_space<vmem>>, vector<1x8x32xf32>
    %78 = vector.shape_cast %77 : vector<1x8x32xf32> to vector<8x32xf32>
    %79 = vector.shape_cast %76 : vector<8x32xf32> to vector<1x8x32xf32>
    tpu.vector_store %arg4[%c0_20, %c0_21, %c0_22], %79 {strides = array<i32>} : memref<1x8x32xf32, #tpu.memory_space<vmem>>, vector<1x8x32xf32>,
    return
  }
  func.func @transform_0(%arg0: i32) -> (i32, i32, i32) {
    %c0_i32 = arith.constant 0 : i32
    %c0_i32_0 = arith.constant 0 : i32
    %c0_i32_1 = arith.constant 0 : i32
    return %arg0, %c0_i32, %c0_i32_0 : i32, i32, i32
  }
  func.func @transform_1(%arg0: i32) -> (i32, i32, i32, i32) {
    %c0_i32 = arith.constant 0 : i32
    %c0_i32_0 = arith.constant 0 : i32
    %c0_i32_1 = arith.constant 0 : i32
    %c0_i32_2 = arith.constant 0 : i32
    return %arg0, %c0_i32, %c0_i32_0, %c0_i32_1 : i32, i32, i32, i32
  }
  func.func @transform_2(%arg0: i32) -> (i32, i32) {
    %c0_i32 = arith.constant 0 : i32
    %c0_i32_0 = arith.constant 0 : i32
    %c0_i32_1 = arith.constant 0 : i32
    return %c0_i32, %c0_i32_0 : i32, i32
  }
  func.func @transform_3(%arg0: i32) -> (i32, i32, i32) {
    %c0_i32 = arith.constant 0 : i32
    %c0_i32_0 = arith.constant 0 : i32
    %c0_i32_1 = arith.constant 0 : i32
    return %arg0, %c0_i32, %c0_i32_0 : i32, i32, i32
  }
}

</mosaic_0001>

<llo_original>
// kernel: tpu_custom_call.1
$region0: #{tpu_custom_call.1}
  #allocation0 [shape = 'u32[]', space=smem, size = 0x4, offset = 0x4, fixed_abs, tag = 'smem constant byte address 0x4 - core index']
  #allocation1 [shape = 'u32[144,128]{1,0:T(1,128)}', space=vmem, size = 0x12000, scoped, tag = 'internal scratch']
  %s0 = inlined_call_operand.vmem [shape: f32[2,32,8], index: 0, kind: input, shape index: {}]
  %s1 = inlined_call_operand.vmem [shape: f32[2,8,4,4], index: 1, kind: input, shape index: {}]
  %s2 = inlined_call_operand.vmem [shape: f32[8,10], index: 2, kind: input, shape index: {}]
  %s3 = inlined_call_operand.hbm [shape: f32[2,8,32], index: 3, kind: output, shape index: {}]
  %s4 = sld [smem:[#allocation0]]
  $region45: #{tpu_custom_call.1} parent=0
    _
  %s6 = ssub.s32 1, %s4
  %s7 = scalar_select 0, %s6, %s4
  $region1: #{tpu_custom_call.1} parent=0
    #allocation2 [shape = 'u8[8192]{0}', space=vmem, size = 0x2000, scoped, tag = 'output window, operand 0']
    #allocation3 [shape = 's32[2]{0}', space=sflag, size = 0x8, scoped, tag = 'scoped memory for tpu_custom_call.1']
    %8 = vsyncpa [#allocation3], 0
    %s9 = scalar_lea.sflag [#allocation3], 1
    %10 = vsyncpa %s9, 0
    loop: start=0, step=1, limit=4
    $region2: #{tpu_custom_call.1} parent=1 // loop_pre_header
      _
    $region3: #{tpu_custom_call.1} parent=1 // loop_header
      %s12 = sphi 0, %s16
      %p13 = scmp.ge.s32.totalorder %s12, 4
      %s22 = sphi 0, %s24
      %s25 = sphi 0, %s22
      %s26 = sphi 0, %s25
      %s42 = sphi 0, %s26
      %s48 = sphi 0, %s50
      %s51 = sphi 0, %s48
      %s52 = sphi 0, %s51
      %s68 = sphi 0, %s52
      %s72 = sphi 0, %s72
      %s74 = sphi 0, %s72
      %s75 = sphi 0, %s74
      %s89 = sphi 0, %s75
      %s95 = sphi 0, %s97
      %s98 = sphi 0, %s95
      %s99 = sphi 0, %s98
      %s115 = sphi 0, %s99
    $region4: #{tpu_custom_call.1} parent=1 // loop_header_branch
      %15 = sbr.rel (%p13) target = $region8
    $region5: #{tpu_custom_call.1} parent=1 // loop_body
      %s17 = ssub.s32 %s12, 1
      %s18 = ssub.s32 %s12, 2
      %s19 = sadd.s32 %s12, 1
      %s20 = ssub.s32 %s12, %s19
      %p21 = scmp.eq.s32.totalorder %s20, 0
      %s23 = sadd.s32 %s22, 1
      %s24 = scalar_select %p21, %s22, %s23
      %p27 = pneg %p21
      %p28 = scmp.eq.s32.totalorder %s12, 1
      %p29 = por %p27, %p28
      %p30 = scmp.ne.s32.totalorder %s22, %s25
      %p31 = scmp.eq.s32.totalorder %s12, 0
      %p32 = por %p30, %p31
      %p33 = scmp.ne.s32.totalorder %s22, %s25
      %p34 = scmp.eq.s32.totalorder %s17, 1
      %p35 = por %p33, %p34
      %p36 = scmp.ne.s32.totalorder %s25, %s26
      %p37 = scmp.eq.s32.totalorder %s17, 0
      %p38 = por %p36, %p37
      %p39 = scmp.ne.s32.totalorder %s25, %s26
      %p40 = scmp.eq.s32.totalorder %s18, 1
      %p41 = por %p39, %p40
      %p43 = scmp.ne.s32.totalorder %s26, %s42
      %p44 = scmp.eq.s32.totalorder %s18, 0
      %p45 = por %p43, %p44
      %s46 = ssub.s32 %s12, %s19
      %p47 = scmp.eq.s32.totalorder %s46, 0
      %s49 = sadd.s32 %s48, 1
      %s50 = scalar_select %p47, %s48, %s49
      %p53 = pneg %p47
      %p54 = scmp.eq.s32.totalorder %s12, 1
      %p55 = por %p53, %p54
      %p56 = scmp.ne.s32.totalorder %s48, %s51
      %p57 = scmp.eq.s32.totalorder %s12, 0
      %p58 = por %p56, %p57
      %p59 = scmp.ne.s32.totalorder %s48, %s51
      %p60 = scmp.eq.s32.totalorder %s17, 1
      %p61 = por %p59, %p60
      %p62 = scmp.ne.s32.totalorder %s51, %s52
      %p63 = scmp.eq.s32.totalorder %s17, 0
      %p64 = por %p62, %p63
      %p65 = scmp.ne.s32.totalorder %s51, %s52
      %p66 = scmp.eq.s32.totalorder %s18, 1
      %p67 = por %p65, %p66
      %p69 = scmp.ne.s32.totalorder %s52, %s68
      %p70 = scmp.eq.s32.totalorder %s18, 0
      %p71 = por %p69, %p70
      %s73 = sadd.s32 %s72, 1
      %p76 = scmp.eq.s32.totalorder %s12, 1
      %p77 = scmp.ne.s32.totalorder %s72, %s74
      %p78 = scmp.eq.s32.totalorder %s12, 0
      %p79 = por %p77, %p78
      %p80 = scmp.ne.s32.totalorder %s72, %s74
      %p81 = scmp.eq.s32.totalorder %s17, 1
      %p82 = por %p80, %p81
      %p83 = scmp.ne.s32.totalorder %s74, %s75
      %p84 = scmp.eq.s32.totalorder %s17, 0
      %p85 = por %p83, %p84
      %p86 = scmp.ne.s32.totalorder %s74, %s75
      %p87 = scmp.eq.s32.totalorder %s18, 1
      %p88 = por %p86, %p87
      %p90 = scmp.ne.s32.totalorder %s75, %s89
      %p91 = scmp.eq.s32.totalorder %s18, 0
      %p92 = por %p90, %p91
      %s93 = ssub.s32 %s12, %s19
      %p94 = scmp.eq.s32.totalorder %s93, 0
      %s96 = sadd.s32 %s95, 1
      %s97 = scalar_select %p94, %s95, %s96
      %p100 = pneg %p94
      %p101 = scmp.eq.s32.totalorder %s12, 1
      %p102 = por %p100, %p101
      %p103 = scmp.ne.s32.totalorder %s95, %s98
      %p104 = scmp.eq.s32.totalorder %s12, 0
      %p105 = por %p103, %p104
      %p106 = scmp.ne.s32.totalorder %s95, %s98
      %p107 = scmp.eq.s32.totalorder %s17, 1
      %p108 = por %p106, %p107
      %p109 = scmp.ne.s32.totalorder %s98, %s99
      %p110 = scmp.eq.s32.totalorder %s17, 0
      %p111 = por %p109, %p110
      %p112 = scmp.ne.s32.totalorder %s98, %s99
      %p113 = scmp.eq.s32.totalorder %s18, 1
      %p114 = por %p112, %p113
      %p116 = scmp.ne.s32.totalorder %s99, %s115
      %p117 = scmp.eq.s32.totalorder %s18, 0
      %p118 = por %p116, %p117
      %p119 = scmp.le.s32.totalorder 1, %s12
      %p120 = scmp.lt.s32.totalorder %s12, 3
      %p121 = pnand %p119, %p120
      %p122 = pneg %p121
      // Predicated region
      $region9: #{tpu_custom_call.1} parent=5 // pred_check
        _
      $region10: #{tpu_custom_call.1} parent=5 // pred_check_branch
        %124 = sbr.rel (%p121) target = $region12
      $region11: #{tpu_custom_call.1} parent=5 // pred_region
        %s125 = ssub.s32 %s12, 1
        // Predicated region
        $region13: #{tpu_custom_call.1} parent=11 // pred_check
          %p126 = pneg %p85
        $region14: #{tpu_custom_call.1} parent=11 // pred_check_branch
          %128 = sbr.rel (%p126) target = $region16
        $region15: #{tpu_custom_call.1} parent=11 // pred_region
          _
        $region16: #{tpu_custom_call.1} parent=11 // pred_fallthru
          _
      $region12: #{tpu_custom_call.1} parent=5 // pred_fallthru
        _
      %p129 = scmp.lt.s32.totalorder %s12, 2
      // Predicated region
      $region17: #{tpu_custom_call.1} parent=5 // pred_check
        %p130 = pneg %p129
      $region18: #{tpu_custom_call.1} parent=5 // pred_check_branch
        %132 = sbr.rel (%p130) target = $region20
      $region19: #{tpu_custom_call.1} parent=5 // pred_region
        // Predicated region
        $region21: #{tpu_custom_call.1} parent=19 // pred_check
          %p133 = pneg %p32
        $region22: #{tpu_custom_call.1} parent=19 // pred_check_branch
          %135 = sbr.rel (%p133) target = $region24
        $region23: #{tpu_custom_call.1} parent=19 // pred_region
          %p136 = scmp.lt.s32.totalorder %s12, 1
          %s137 = scalar_select %p136, %s12, 1
          %s138 = smul.addr %s137, 4
          %s139 = smul.addr %s138, 8
          %s140 = scalar_lea.vmem %s0, %s139
        $region24: #{tpu_custom_call.1} parent=19 // pred_fallthru
          _
        // Predicated region
        $region25: #{tpu_custom_call.1} parent=19 // pred_check
          %p141 = pneg %p58
        $region26: #{tpu_custom_call.1} parent=19 // pred_check_branch
          %143 = sbr.rel (%p141) target = $region28
        $region27: #{tpu_custom_call.1} parent=19 // pred_region
          %p144 = scmp.lt.s32.totalorder %s12, 1
          %s145 = scalar_select %p144, %s12, 1
          %s146 = smul.addr %s145, 8
          %s147 = smul.addr %s146, 4
          %s148 = scalar_lea.vmem %s1, %s147
        $region28: #{tpu_custom_call.1} parent=19 // pred_fallthru
          _
      $region20: #{tpu_custom_call.1} parent=5 // pred_fallthru
        _
      %p149 = scmp.le.s32.totalorder 1, %s12
      %p150 = scmp.lt.s32.totalorder %s12, 3
      %p151 = pnand %p149, %p150
      %p152 = pneg %p151
      // Predicated region
      $region29: #{tpu_custom_call.1} parent=5 // pred_check
        _
      $region30: #{tpu_custom_call.1} parent=5 // pred_check_branch
        %154 = sbr.rel (%p151) target = $region32
      $region31: #{tpu_custom_call.1} parent=5 // pred_region
        %s155 = ssub.s32 %s12, 1
        %p156 = scmp.lt.s32.totalorder %s17, 1
        %s157 = scalar_select %p156, %s17, 1
        %s158 = smul.addr %s157, 4
        %s159 = smul.addr %s158, 8
        %s160 = scalar_lea.vmem %s0, %s159
        %p161 = pneg %p38
        %p162 = pneg %p35
        %p163 = scmp.lt.s32.totalorder %s17, 1
        %s164 = scalar_select %p163, %s17, 1
        %s165 = smul.addr %s164, 8
        %s166 = smul.addr %s165, 4
        %s167 = scalar_lea.vmem %s1, %s166
        %p168 = pneg %p64
        %p169 = pneg %p61
        %p170 = pneg %p85
        %p171 = pneg %p82
        %p172 = pneg %p111
        %p173 = pneg %p108
        %s174 = sand.u32 %s98, 1
        %s175 = scalar_lea.sflag [#allocation3], %s174
        %s176 = sand.u32 %s98, 1
        %s177 = smul.addr %s176, 8
        %s178 = scalar_lea.vmem [#allocation2], %s177
        %p179 = scmp.lt.s32.totalorder %s17, 1
        %s180 = scalar_select %p179, %s17, 1
        %s181 = smul.addr %s180, 4
        %s182 = smul.addr %s181, 8
        %s183 = scalar_lea.vmem %s0, %s182
        %p184 = scmp.lt.s32.totalorder %s17, 1
        %s185 = scalar_select %p184, %s17, 1
        %s186 = smul.addr %s185, 8
        %s187 = smul.addr %s186, 4
        %s188 = scalar_lea.vmem %s1, %s187
        %v189 = vld [vmem:[%s183] sm:$0xff]
        %v190 = vld [vmem:[%s183 + $0x8] sm:$0xff]
        %v191 = vld [vmem:[%s183 + $0x10] sm:$0xff]
        %v192 = vld [vmem:[%s183 + $0x18] sm:$0xff]
        %v193 = vld [vmem:[%s2] sm:$0xff]
        %vm194 = vcmask 64512
        %v196 = vsel %vm194, %v189, 0
        %v199 = vsel %vm194, %v190, 0
        %v202 = vsel %vm194, %v191, 0
        %v205 = vsel %vm194, %v192, 0
        %207 = vmatprep.subr.mxu0 0.0
        %208 = vmatpush1.msra.mxu0 %v193
        %209 = vmatprep.subr.mxu0 0.0
        %210 = vmatpush1.msra.mxu0 0.0
        %211 = vmatprep.subr.mxu0 0.0
        %212 = vmatpush1.msra.mxu0 0.0
        %213 = vmatprep.subr.mxu0 0.0
        %214 = vmatpush1.msra.mxu0 0.0
        %215 = vmatprep.subr.mxu0 0.0
        %216 = vmatpush1.msra.mxu0 0.0
        %217 = vmatprep.subr.mxu0 0.0
        %218 = vmatpush1.msra.mxu0 0.0
        %219 = vmatprep.subr.mxu0 0.0
        %220 = vmatpush1.msra.mxu0 0.0
        %221 = vmatprep.subr.mxu0 0.0
        %222 = vmatpush1.msra.mxu0 0.0
        %223 = vmatprep.subr.mxu0 0.0
        %224 = vmatpush1.msra.mxu0 0.0
        %225 = vmatprep.subr.mxu0 0.0
        %226 = vmatpush1.msra.mxu0 0.0
        %227 = vmatprep.subr.mxu0 0.0
        %228 = vmatpush1.msra.mxu0 0.0
        %229 = vmatprep.subr.mxu0 0.0
        %230 = vmatpush1.msra.mxu0 0.0
        %231 = vmatprep.subr.mxu0 0.0
        %232 = vmatpush1.msra.mxu0 0.0
        %233 = vmatprep.subr.mxu0 0.0
        %234 = vmatpush1.msra.mxu0 0.0
        %235 = vmatprep.subr.mxu0 0.0
        %236 = vmatpush1.msra.mxu0 0.0
        %237 = vmatprep.subr.mxu0 0.0
        %238 = vmatpush1.msra.mxu0 0.0
        %239 = vmatprep.subr.mxu0 0.0
        %240 = vmatpush1.msra.mxu0 0.0
        %241 = vmatprep.subr.mxu0 0.0
        %242 = vmatpush1.msra.mxu0 0.0
        %243 = vmatprep.subr.mxu0 0.0
        %244 = vmatpush1.msra.mxu0 0.0
        %245 = vmatprep.subr.mxu0 0.0
        %246 = vmatpush1.msra.mxu0 0.0
        %247 = vmatprep.subr.mxu0 0.0
        %248 = vmatpush1.msra.mxu0 0.0
        %249 = vmatprep.subr.mxu0 0.0
        %250 = vmatpush1.msra.mxu0 0.0
        %251 = vmatprep.subr.mxu0 0.0
        %252 = vmatpush1.msra.mxu0 0.0
        %253 = vmatprep.subr.mxu0 0.0
        %254 = vmatpush1.msra.mxu0 0.0
        %255 = vmatprep.subr.mxu0 0.0
        %256 = vmatpush1.msra.mxu0 0.0
        %257 = vmatprep.subr.mxu0 0.0
        %258 = vmatpush1.msra.mxu0 0.0
        %259 = vmatprep.subr.mxu0 0.0
        %260 = vmatpush1.msra.mxu0 0.0
        %261 = vmatprep.subr.mxu0 0.0
        %262 = vmatpush1.msra.mxu0 0.0
        %263 = vmatprep.subr.mxu0 0.0
        %264 = vmatpush1.msra.mxu0 0.0
        %265 = vmatprep.subr.mxu0 0.0
        %266 = vmatpush1.msra.mxu0 0.0
        %267 = vmatprep.subr.mxu0 0.0
        %268 = vmatpush1.msra.mxu0 0.0
        %269 = vmatprep.subr.mxu0 0.0
        %270 = vmatpush1.msra.mxu0 0.0
        %271 = vmatprep.mubr.f32.mxu0 0.0
        %272 = vmatmul.mubr.f32.gmra.mrb[0].mxu0 %v196
        %v273 = vpop.f32.mrb[0].mxu0
        %v274 = vadd.f32 0.0, %v273
        %v275 = vpop.f32.mrb[0].mxu0
        %276 = vmatprep.mubr.f32.mxu0 0.0
        %277 = vmatmul.mubr.f32.gmra.mrb[0].mxu0 %v199
        %v278 = vpop.f32.mrb[0].mxu0
        %v279 = vadd.f32 0.0, %v278
        %v280 = vpop.f32.mrb[0].mxu0
        %281 = vmatprep.mubr.f32.mxu0 0.0
        %282 = vmatmul.mubr.f32.gmra.mrb[0].mxu0 %v202
        %v283 = vpop.f32.mrb[0].mxu0
        %v284 = vadd.f32 0.0, %v283
        %v285 = vpop.f32.mrb[0].mxu0
        %286 = vmatprep.mubr.f32.mxu0 0.0
        %287 = vmatmul.mubr.f32.gmra.mrb[0].mxu0 %v205
        %v288 = vpop.f32.mrb[0].mxu0
        %v289 = vadd.f32 0.0, %v288
        %v290 = vpop.f32.mrb[0].mxu0
        %291 = vdwg.mxu0
        %v296 = vcombine.high %v274, %v274
        %v297 = vcombine.high %v279, %v279
        %v298 = vcombine.high %v284, %v284
        %v299 = vcombine.high %v289, %v289
        %v304 = vadd.f32 %v274, 0.0
        %v305 = vadd.f32 %v296, 0.0
        %v306 = vadd.f32 %v279, 0.0
        %v307 = vadd.f32 %v297, 0.0
        %v308 = vadd.f32 %v284, 0.0
        %v309 = vadd.f32 %v298, 0.0
        %v310 = vadd.f32 %v289, 0.0
        %v311 = vadd.f32 %v299, 0.0
        %313 = vset.pattern.permute.xlu0 8
        %314 = vperm.xlu0 %313, %v304
        %v315 = vpop.permute.xlu0 %314
        %v318 = vunpack.c.l.s4 839922192
        %v319 = vunpack.c.0.s8 %v318
        %v320 = vlaneseq
        %v321 = vshrl.u32 %v320, 7
        %v322 = vsub.s32 %v319, %v321
        %v323 = vrot.slane %v315, %v322
        %325 = vset.pattern.permute.xlu0 8
        %326 = vperm.xlu0 %325, %v305
        %v327 = vpop.permute.xlu0 %326
        %v330 = vunpack.c.l.s4 839922192
        %v331 = vunpack.c.0.s8 %v330
        %v332 = vlaneseq
        %v333 = vshrl.u32 %v332, 7
        %v334 = vsub.s32 %v331, %v333
        %v335 = vrot.slane %v327, %v334
        %337 = vset.pattern.permute.xlu0 8
        %338 = vperm.xlu0 %337, %v306
        %v339 = vpop.permute.xlu0 %338
        %v342 = vunpack.c.l.s4 839922192
        %v343 = vunpack.c.0.s8 %v342
        %v344 = vlaneseq
        %v345 = vshrl.u32 %v344, 7
        %v346 = vsub.s32 %v343, %v345
        %v347 = vrot.slane %v339, %v346
        %349 = vset.pattern.permute.xlu0 8
        %350 = vperm.xlu0 %349, %v307
        %v351 = vpop.permute.xlu0 %350
        %v354 = vunpack.c.l.s4 839922192
        %v355 = vunpack.c.0.s8 %v354
        %v356 = vlaneseq
        %v357 = vshrl.u32 %v356, 7
        %v358 = vsub.s32 %v355, %v357
        %v359 = vrot.slane %v351, %v358
        %361 = vset.pattern.permute.xlu0 8
        %362 = vperm.xlu0 %361, %v308
        %v363 = vpop.permute.xlu0 %362
        %v366 = vunpack.c.l.s4 839922192
        %v367 = vunpack.c.0.s8 %v366
        %v368 = vlaneseq
        %v369 = vshrl.u32 %v368, 7
        %v370 = vsub.s32 %v367, %v369
        %v371 = vrot.slane %v363, %v370
        %373 = vset.pattern.permute.xlu0 8
        %374 = vperm.xlu0 %373, %v309
        %v375 = vpop.permute.xlu0 %374
        %v378 = vunpack.c.l.s4 839922192
        %v379 = vunpack.c.0.s8 %v378
        %v380 = vlaneseq
        %v381 = vshrl.u32 %v380, 7
        %v382 = vsub.s32 %v379, %v381
        %v383 = vrot.slane %v375, %v382
        %385 = vset.pattern.permute.xlu0 8
        %386 = vperm.xlu0 %385, %v310
        %v387 = vpop.permute.xlu0 %386
        %v390 = vunpack.c.l.s4 839922192
        %v391 = vunpack.c.0.s8 %v390
        %v392 = vlaneseq
        %v393 = vshrl.u32 %v392, 7
        %v394 = vsub.s32 %v391, %v393
        %v395 = vrot.slane %v387, %v394
        %397 = vset.pattern.permute.xlu0 8
        %398 = vperm.xlu0 %397, %v311
        %v399 = vpop.permute.xlu0 %398
        %v402 = vunpack.c.l.s4 839922192
        %v403 = vunpack.c.0.s8 %v402
        %v404 = vlaneseq
        %v405 = vshrl.u32 %v404, 7
        %v406 = vsub.s32 %v403, %v405
        %v407 = vrot.slane %v399, %v406
        %408 = vset.pattern.permute.xlu0 9
        %409 = vperm.xlu0 %408, %v304
        %v410 = vpop.permute.xlu0 %409
        %411 = vset.pattern.permute.xlu0 9
        %412 = vperm.xlu0 %411, %v305
        %v413 = vpop.permute.xlu0 %412
        %414 = vset.pattern.permute.xlu0 9
        %415 = vperm.xlu0 %414, %v306
        %v416 = vpop.permute.xlu0 %415
        %417 = vset.pattern.permute.xlu0 9
        %418 = vperm.xlu0 %417, %v307
        %v419 = vpop.permute.xlu0 %418
        %420 = vset.pattern.permute.xlu0 9
        %421 = vperm.xlu0 %420, %v308
        %v422 = vpop.permute.xlu0 %421
        %423 = vset.pattern.permute.xlu0 9
        %424 = vperm.xlu0 %423, %v309
        %v425 = vpop.permute.xlu0 %424
        %426 = vset.pattern.permute.xlu0 9
        %427 = vperm.xlu0 %426, %v310
        %v428 = vpop.permute.xlu0 %427
        %429 = vset.pattern.permute.xlu0 9
        %430 = vperm.xlu0 %429, %v311
        %v431 = vpop.permute.xlu0 %430
        %v432 = vlaneseq
        %v433 = vand.u32 %v432, 127
        %v434 = vlaneseq
        %v435 = vshrl.u32 %v434, 7
        %v436 = vsub.s32 %v433, %v435
        %v437 = vrot.slane %v410, %v436
        %v438 = vlaneseq
        %v439 = vshrl.u32 %v438, 7
        %v440 = vsub.s32 %v433, %v439
        %v441 = vrot.slane %v413, %v440
        %v442 = vlaneseq
        %v443 = vshrl.u32 %v442, 7
        %v444 = vsub.s32 %v433, %v443
        %v445 = vrot.slane %v416, %v444
        %v446 = vlaneseq
        %v447 = vshrl.u32 %v446, 7
        %v448 = vsub.s32 %v433, %v447
        %v449 = vrot.slane %v419, %v448
        %v450 = vlaneseq
        %v451 = vshrl.u32 %v450, 7
        %v452 = vsub.s32 %v433, %v451
        %v453 = vrot.slane %v422, %v452
        %v454 = vlaneseq
        %v455 = vshrl.u32 %v454, 7
        %v456 = vsub.s32 %v433, %v455
        %v457 = vrot.slane %v425, %v456
        %v458 = vlaneseq
        %v459 = vshrl.u32 %v458, 7
        %v460 = vsub.s32 %v433, %v459
        %v461 = vrot.slane %v428, %v460
        %v462 = vlaneseq
        %v463 = vshrl.u32 %v462, 7
        %v464 = vsub.s32 %v433, %v463
        %v465 = vrot.slane %v431, %v464
        %vm466 = vcmask 1041409
        %vm467 = vcmask 1042434
        %v468 = vsel %vm467, %v437, %v437
        %vm469 = vcmask 1043459
        %v470 = vsel %vm469, %v437, %v468
        %v471 = vsel %vm467, %v441, %v441
        %v472 = vsel %vm469, %v441, %v471
        %v473 = vsel %vm467, %v445, %v445
        %v474 = vsel %vm469, %v445, %v473
        %v475 = vsel %vm467, %v449, %v449
        %v476 = vsel %vm469, %v449, %v475
        %v477 = vsel %vm467, %v453, %v453
        %v478 = vsel %vm469, %v453, %v477
        %v479 = vsel %vm467, %v457, %v457
        %v480 = vsel %vm469, %v457, %v479
        %v481 = vsel %vm467, %v461, %v461
        %v482 = vsel %vm469, %v461, %v481
        %v483 = vsel %vm467, %v465, %v465
        %v484 = vsel %vm469, %v465, %v483
        %v493 = vadd.f32 %v323, %v470
        %v494 = vadd.f32 %v335, %v472
        %v495 = vadd.f32 %v347, %v474
        %v496 = vadd.f32 %v359, %v476
        %v497 = vadd.f32 %v371, %v478
        %v498 = vadd.f32 %v383, %v480
        %v499 = vadd.f32 %v395, %v482
        %v500 = vadd.f32 %v407, %v484
        %vm501 = vcmp.gt.f32.partialorder %v493, 0.0
        %vm502 = vcmp.gt.f32.partialorder %v494, 0.0
        %vm503 = vcmp.gt.f32.partialorder %v495, 0.0
        %vm504 = vcmp.gt.f32.partialorder %v496, 0.0
        %vm505 = vcmp.gt.f32.partialorder %v497, 0.0
        %vm506 = vcmp.gt.f32.partialorder %v498, 0.0
        %vm507 = vcmp.gt.f32.partialorder %v499, 0.0
        %vm508 = vcmp.gt.f32.partialorder %v500, 0.0
        %v509 = vmul.f32 %v493, 0.2
        %v510 = vmul.f32 %v494, 0.2
        %v511 = vmul.f32 %v495, 0.2
        %v512 = vmul.f32 %v496, 0.2
        %v513 = vmul.f32 %v497, 0.2
        %v514 = vmul.f32 %v498, 0.2
        %v515 = vmul.f32 %v499, 0.2
        %v516 = vmul.f32 %v500, 0.2
        %v517 = vsel %vm501, %v493, %v509
        %v518 = vsel %vm502, %v494, %v510
        %v519 = vsel %vm503, %v495, %v511
        %v520 = vsel %vm504, %v496, %v512
        %v521 = vsel %vm505, %v497, %v513
        %v522 = vsel %vm506, %v498, %v514
        %v523 = vsel %vm507, %v499, %v515
        %v524 = vsel %vm508, %v500, %v516
        %v525 = vld [vmem:[%s188] sm:$0xf]
        %v526 = vld [vmem:[%s188 + $0x4] sm:$0xf]
        %v527 = vld [vmem:[%s188 + $0x8] sm:$0xf]
        %v528 = vld [vmem:[%s188 + $0xc] sm:$0xf]
        %v529 = vld [vmem:[%s188 + $0x10] sm:$0xf]
        %v530 = vld [vmem:[%s188 + $0x14] sm:$0xf]
        %v531 = vld [vmem:[%s188 + $0x18] sm:$0xf]
        %v532 = vld [vmem:[%s188 + $0x1c] sm:$0xf]
        %vm533 = vcmp.gt.f32.partialorder %v525, 0.0
        %vm534 = vcmp.gt.f32.partialorder %v526, 0.0
        %vm535 = vcmp.gt.f32.partialorder %v527, 0.0
        %vm536 = vcmp.gt.f32.partialorder %v528, 0.0
        %vm537 = vcmp.gt.f32.partialorder %v529, 0.0
        %vm538 = vcmp.gt.f32.partialorder %v530, 0.0
        %vm539 = vcmp.gt.f32.partialorder %v531, 0.0
        %vm540 = vcmp.gt.f32.partialorder %v532, 0.0
        %v541 = vsel %vm533, %v517, -9e+15
        %v542 = vsel %vm534, %v518, -9e+15
        %v543 = vsel %vm535, %v519, -9e+15
        %v544 = vsel %vm536, %v520, -9e+15
        %v545 = vsel %vm537, %v521, -9e+15
        %v546 = vsel %vm538, %v522, -9e+15
        %v547 = vsel %vm539, %v523, -9e+15
        %v548 = vsel %vm540, %v524, -9e+15
        %vm549 = vcmask 27648
        %v550 = vsel %vm549, %v541, -inf
        %v551 = vsel %vm549, %v542, -inf
        %v552 = vsel %vm549, %v543, -inf
        %v553 = vsel %vm549, %v544, -inf
        %v554 = vsel %vm549, %v545, -inf
        %v555 = vmax.f32 %v550, %v554
        %v556 = vsel %vm549, %v546, -inf
        %v557 = vmax.f32 %v551, %v556
        %v558 = vsel %vm549, %v547, -inf
        %v559 = vmax.f32 %v552, %v558
        %v560 = vsel %vm549, %v548, -inf
        %v561 = vmax.f32 %v553, %v560
        %v562 = vmax.f32 %v555, %v557
        %v563 = vmax.f32 %v559, %v561
        %v564 = vmax.f32 %v562, %v563
        %v565 = vsub.f32 %v541, %v564
        %v566 = vsub.f32 %v542, %v564
        %v567 = vsub.f32 %v543, %v564
        %v568 = vsub.f32 %v544, %v564
        %v569 = vsub.f32 %v545, %v564
        %v570 = vsub.f32 %v546, %v564
        %v571 = vsub.f32 %v547, %v564
        %v572 = vsub.f32 %v548, %v564
        %v573 = vmul.f32 %v565, 1.442695
        %v574 = vpow.pop %v573
        %v575 = vmul.f32 %v566, 1.442695
        %v576 = vpow.pop %v575
        %v577 = vmul.f32 %v567, 1.442695
        %v578 = vpow.pop %v577
        %v579 = vmul.f32 %v568, 1.442695
        %v580 = vpow.pop %v579
        %v581 = vmul.f32 %v569, 1.442695
        %v582 = vpow.pop %v581
        %v583 = vmul.f32 %v570, 1.442695
        %v584 = vpow.pop %v583
        %v585 = vmul.f32 %v571, 1.442695
        %v586 = vpow.pop %v585
        %v587 = vmul.f32 %v572, 1.442695
        %v588 = vpow.pop %v587
        %v589 = vsel %vm549, %v574, 0.0
        %v590 = vsel %vm549, %v576, 0.0
        %v591 = vadd.f32 %v589, %v590
        %v592 = vsel %vm549, %v578, 0.0
        %v593 = vadd.f32 %v591, %v592
        %v594 = vsel %vm549, %v580, 0.0
        %v595 = vadd.f32 %v593, %v594
        %v596 = vsel %vm549, %v582, 0.0
        %v597 = vadd.f32 %v595, %v596
        %v598 = vsel %vm549, %v584, 0.0
        %v599 = vadd.f32 %v597, %v598
        %v600 = vsel %vm549, %v586, 0.0
        %v601 = vadd.f32 %v599, %v600
        %v602 = vsel %vm549, %v588, 0.0
        %v603 = vadd.f32 %v601, %v602
        %v604 = vrcp.pop %v603
        %v605 = vmul.f32 %v603, %v604
        %v606 = vsub.f32 2.0, %v605
        %v607 = vmul.f32 %v604, %v606
        %v608 = vmul.f32 %v574, %v607
        %v609 = vmul.f32 %v576, %v607
        %v610 = vmul.f32 %v578, %v607
        %v611 = vmul.f32 %v580, %v607
        %v612 = vmul.f32 %v582, %v607
        %v613 = vmul.f32 %v584, %v607
        %v614 = vmul.f32 %v586, %v607
        %v615 = vmul.f32 %v588, %v607
        %617 = vset.pattern.permute.xlu0 0
        %618 = vperm.xlu0 %617, %v608
        %v619 = vpop.permute.xlu0 %618
        %622 = vset.pattern.permute.xlu0 0
        %623 = vperm.xlu0 %622, %v609
        %v624 = vpop.permute.xlu0 %623
        %627 = vset.pattern.permute.xlu0 0
        %628 = vperm.xlu0 %627, %v610
        %v629 = vpop.permute.xlu0 %628
        %632 = vset.pattern.permute.xlu0 0
        %633 = vperm.xlu0 %632, %v611
        %v634 = vpop.permute.xlu0 %633
        %637 = vset.pattern.permute.xlu0 0
        %638 = vperm.xlu0 %637, %v612
        %v639 = vpop.permute.xlu0 %638
        %642 = vset.pattern.permute.xlu0 0
        %643 = vperm.xlu0 %642, %v613
        %v644 = vpop.permute.xlu0 %643
        %647 = vset.pattern.permute.xlu0 0
        %648 = vperm.xlu0 %647, %v614
        %v649 = vpop.permute.xlu0 %648
        %652 = vset.pattern.permute.xlu0 0
        %653 = vperm.xlu0 %652, %v615
        %v654 = vpop.permute.xlu0 %653
        %v656 = vlaneseq
        %v657 = vshrl.u32 %v656, 7
        %v658 = vsub.s32 0, %v657
        %v659 = vrot.slane %v274, %v658
        %v660 = vlaneseq
        %v661 = vshrl.u32 %v660, 7
        %v662 = vsub.s32 0, %v661
        %v663 = vrot.slane %v296, %v662
        %v664 = vlaneseq
        %v665 = vshrl.u32 %v664, 7
        %v666 = vsub.s32 0, %v665
        %v667 = vrot.slane %v279, %v666
        %v668 = vlaneseq
        %v669 = vshrl.u32 %v668, 7
        %v670 = vsub.s32 0, %v669
        %v671 = vrot.slane %v297, %v670
        %v672 = vlaneseq
        %v673 = vshrl.u32 %v672, 7
        %v674 = vsub.s32 0, %v673
        %v675 = vrot.slane %v284, %v674
        %v676 = vlaneseq
        %v677 = vshrl.u32 %v676, 7
        %v678 = vsub.s32 0, %v677
        %v679 = vrot.slane %v298, %v678
        %v680 = vlaneseq
        %v681 = vshrl.u32 %v680, 7
        %v682 = vsub.s32 0, %v681
        %v683 = vrot.slane %v289, %v682
        %v684 = vlaneseq
        %v685 = vshrl.u32 %v684, 7
        %v686 = vsub.s32 0, %v685
        %v687 = vrot.slane %v299, %v686
        %v688 = vmul.f32 %v619, %v659
        %v689 = vmul.f32 %v624, %v663
        %v690 = vmul.f32 %v629, %v667
        %v691 = vmul.f32 %v634, %v671
        %v692 = vmul.f32 %v639, %v675
        %v693 = vmul.f32 %v644, %v679
        %v694 = vmul.f32 %v649, %v683
        %v695 = vmul.f32 %v654, %v687
        %696 = vset.pattern.permute.xlu0 1
        %697 = vperm.xlu0 %696, %v608
        %v698 = vpop.permute.xlu0 %697
        %700 = vset.pattern.permute.xlu0 1
        %701 = vperm.xlu0 %700, %v609
        %v702 = vpop.permute.xlu0 %701
        %704 = vset.pattern.permute.xlu0 1
        %705 = vperm.xlu0 %704, %v610
        %v706 = vpop.permute.xlu0 %705
        %708 = vset.pattern.permute.xlu0 1
        %709 = vperm.xlu0 %708, %v611
        %v710 = vpop.permute.xlu0 %709
        %712 = vset.pattern.permute.xlu0 1
        %713 = vperm.xlu0 %712, %v612
        %v714 = vpop.permute.xlu0 %713
        %716 = vset.pattern.permute.xlu0 1
        %717 = vperm.xlu0 %716, %v613
        %v718 = vpop.permute.xlu0 %717
        %720 = vset.pattern.permute.xlu0 1
        %721 = vperm.xlu0 %720, %v614
        %v722 = vpop.permute.xlu0 %721
        %724 = vset.pattern.permute.xlu0 1
        %725 = vperm.xlu0 %724, %v615
        %v726 = vpop.permute.xlu0 %725
        %v728 = vlaneseq
        %v729 = vshrl.u32 %v728, 7
        %v730 = vsub.s32 1, %v729
        %v731 = vrot.slane %v274, %v730
        %v732 = vlaneseq
        %v733 = vshrl.u32 %v732, 7
        %v734 = vsub.s32 1, %v733
        %v735 = vrot.slane %v296, %v734
        %v736 = vlaneseq
        %v737 = vshrl.u32 %v736, 7
        %v738 = vsub.s32 1, %v737
        %v739 = vrot.slane %v279, %v738
        %v740 = vlaneseq
        %v741 = vshrl.u32 %v740, 7
        %v742 = vsub.s32 1, %v741
        %v743 = vrot.slane %v297, %v742
        %v744 = vlaneseq
        %v745 = vshrl.u32 %v744, 7
        %v746 = vsub.s32 1, %v745
        %v747 = vrot.slane %v284, %v746
        %v748 = vlaneseq
        %v749 = vshrl.u32 %v748, 7
        %v750 = vsub.s32 1, %v749
        %v751 = vrot.slane %v298, %v750
        %v752 = vlaneseq
        %v753 = vshrl.u32 %v752, 7
        %v754 = vsub.s32 1, %v753
        %v755 = vrot.slane %v289, %v754
        %v756 = vlaneseq
        %v757 = vshrl.u32 %v756, 7
        %v758 = vsub.s32 1, %v757
        %v759 = vrot.slane %v299, %v758
        %v760 = vmul.f32 %v698, %v731
        %v761 = vmul.f32 %v702, %v735
        %v762 = vmul.f32 %v706, %v739
        %v763 = vmul.f32 %v710, %v743
        %v764 = vmul.f32 %v714, %v747
        %v765 = vmul.f32 %v718, %v751
        %v766 = vmul.f32 %v722, %v755
        %v767 = vmul.f32 %v726, %v759
        %v768 = vadd.f32 %v688, %v760
        %v769 = vadd.f32 %v689, %v761
        %v770 = vadd.f32 %v690, %v762
        %v771 = vadd.f32 %v691, %v763
        %v772 = vadd.f32 %v692, %v764
        %v773 = vadd.f32 %v693, %v765
        %v774 = vadd.f32 %v694, %v766
        %v775 = vadd.f32 %v695, %v767
        %776 = vset.pattern.permute.xlu0 2
        %777 = vperm.xlu0 %776, %v608
        %v778 = vpop.permute.xlu0 %777
        %780 = vset.pattern.permute.xlu0 2
        %781 = vperm.xlu0 %780, %v609
        %v782 = vpop.permute.xlu0 %781
        %784 = vset.pattern.permute.xlu0 2
        %785 = vperm.xlu0 %784, %v610
        %v786 = vpop.permute.xlu0 %785
        %788 = vset.pattern.permute.xlu0 2
        %789 = vperm.xlu0 %788, %v611
        %v790 = vpop.permute.xlu0 %789
        %792 = vset.pattern.permute.xlu0 2
        %793 = vperm.xlu0 %792, %v612
        %v794 = vpop.permute.xlu0 %793
        %796 = vset.pattern.permute.xlu0 2
        %797 = vperm.xlu0 %796, %v613
        %v798 = vpop.permute.xlu0 %797
        %800 = vset.pattern.permute.xlu0 2
        %801 = vperm.xlu0 %800, %v614
        %v802 = vpop.permute.xlu0 %801
        %804 = vset.pattern.permute.xlu0 2
        %805 = vperm.xlu0 %804, %v615
        %v806 = vpop.permute.xlu0 %805
        %v808 = vlaneseq
        %v809 = vshrl.u32 %v808, 7
        %v810 = vsub.s32 2, %v809
        %v811 = vrot.slane %v274, %v810
        %v812 = vlaneseq
        %v813 = vshrl.u32 %v812, 7
        %v814 = vsub.s32 2, %v813
        %v815 = vrot.slane %v296, %v814
        %v816 = vlaneseq
        %v817 = vshrl.u32 %v816, 7
        %v818 = vsub.s32 2, %v817
        %v819 = vrot.slane %v279, %v818
        %v820 = vlaneseq
        %v821 = vshrl.u32 %v820, 7
        %v822 = vsub.s32 2, %v821
        %v823 = vrot.slane %v297, %v822
        %v824 = vlaneseq
        %v825 = vshrl.u32 %v824, 7
        %v826 = vsub.s32 2, %v825
        %v827 = vrot.slane %v284, %v826
        %v828 = vlaneseq
        %v829 = vshrl.u32 %v828, 7
        %v830 = vsub.s32 2, %v829
        %v831 = vrot.slane %v298, %v830
        %v832 = vlaneseq
        %v833 = vshrl.u32 %v832, 7
        %v834 = vsub.s32 2, %v833
        %v835 = vrot.slane %v289, %v834
        %v836 = vlaneseq
        %v837 = vshrl.u32 %v836, 7
        %v838 = vsub.s32 2, %v837
        %v839 = vrot.slane %v299, %v838
        %v840 = vmul.f32 %v778, %v811
        %v841 = vmul.f32 %v782, %v815
        %v842 = vmul.f32 %v786, %v819
        %v843 = vmul.f32 %v790, %v823
        %v844 = vmul.f32 %v794, %v827
        %v845 = vmul.f32 %v798, %v831
        %v846 = vmul.f32 %v802, %v835
        %v847 = vmul.f32 %v806, %v839
        %v848 = vadd.f32 %v768, %v840
        %v849 = vadd.f32 %v769, %v841
        %v850 = vadd.f32 %v770, %v842
        %v851 = vadd.f32 %v771, %v843
        %v852 = vadd.f32 %v772, %v844
        %v853 = vadd.f32 %v773, %v845
        %v854 = vadd.f32 %v774, %v846
        %v855 = vadd.f32 %v775, %v847
        %856 = vset.pattern.permute.xlu0 3
        %857 = vperm.xlu0 %856, %v608
        %v858 = vpop.permute.xlu0 %857
        %860 = vset.pattern.permute.xlu0 3
        %861 = vperm.xlu0 %860, %v609
        %v862 = vpop.permute.xlu0 %861
        %864 = vset.pattern.permute.xlu0 3
        %865 = vperm.xlu0 %864, %v610
        %v866 = vpop.permute.xlu0 %865
        %868 = vset.pattern.permute.xlu0 3
        %869 = vperm.xlu0 %868, %v611
        %v870 = vpop.permute.xlu0 %869
        %872 = vset.pattern.permute.xlu0 3
        %873 = vperm.xlu0 %872, %v612
        %v874 = vpop.permute.xlu0 %873
        %876 = vset.pattern.permute.xlu0 3
        %877 = vperm.xlu0 %876, %v613
        %v878 = vpop.permute.xlu0 %877
        %880 = vset.pattern.permute.xlu0 3
        %881 = vperm.xlu0 %880, %v614
        %v882 = vpop.permute.xlu0 %881
        %884 = vset.pattern.permute.xlu0 3
        %885 = vperm.xlu0 %884, %v615
        %v886 = vpop.permute.xlu0 %885
        %v888 = vlaneseq
        %v889 = vshrl.u32 %v888, 7
        %v890 = vsub.s32 3, %v889
        %v891 = vrot.slane %v274, %v890
        %v892 = vlaneseq
        %v893 = vshrl.u32 %v892, 7
        %v894 = vsub.s32 3, %v893
        %v895 = vrot.slane %v296, %v894
        %v896 = vlaneseq
        %v897 = vshrl.u32 %v896, 7
        %v898 = vsub.s32 3, %v897
        %v899 = vrot.slane %v279, %v898
        %v900 = vlaneseq
        %v901 = vshrl.u32 %v900, 7
        %v902 = vsub.s32 3, %v901
        %v903 = vrot.slane %v297, %v902
        %v904 = vlaneseq
        %v905 = vshrl.u32 %v904, 7
        %v906 = vsub.s32 3, %v905
        %v907 = vrot.slane %v284, %v906
        %v908 = vlaneseq
        %v909 = vshrl.u32 %v908, 7
        %v910 = vsub.s32 3, %v909
        %v911 = vrot.slane %v298, %v910
        %v912 = vlaneseq
        %v913 = vshrl.u32 %v912, 7
        %v914 = vsub.s32 3, %v913
        %v915 = vrot.slane %v289, %v914
        %v916 = vlaneseq
        %v917 = vshrl.u32 %v916, 7
        %v918 = vsub.s32 3, %v917
        %v919 = vrot.slane %v299, %v918
        %v920 = vmul.f32 %v858, %v891
        %v921 = vmul.f32 %v862, %v895
        %v922 = vmul.f32 %v866, %v899
        %v923 = vmul.f32 %v870, %v903
        %v924 = vmul.f32 %v874, %v907
        %v925 = vmul.f32 %v878, %v911
        %v926 = vmul.f32 %v882, %v915
        %v927 = vmul.f32 %v886, %v919
        %v928 = vadd.f32 %v848, %v920
        %v929 = vadd.f32 %v849, %v921
        %v930 = vadd.f32 %v850, %v922
        %v931 = vadd.f32 %v851, %v923
        %v932 = vadd.f32 %v852, %v924
        %v933 = vadd.f32 %v853, %v925
        %v934 = vadd.f32 %v854, %v926
        %v935 = vadd.f32 %v855, %v927
        %v944 = vrot.slane %v928, 1
        %v945 = vrot.slane %v929, 1
        %v946 = vrot.slane %v930, 1
        %v947 = vrot.slane %v931, 1
        %v948 = vrot.slane %v932, 1
        %v949 = vrot.slane %v933, 1
        %v950 = vrot.slane %v934, 1
        %v951 = vrot.slane %v935, 1
        %952 = vrot.lane.b32.xlu0 %v944, 8
        %v953 = vpop.permute.xlu0 %952
        %954 = vrot.lane.b32.xlu0 %v945, 8
        %v955 = vpop.permute.xlu0 %954
        %956 = vrot.lane.b32.xlu0 %v946, 8
        %v957 = vpop.permute.xlu0 %956
        %958 = vrot.lane.b32.xlu0 %v947, 8
        %v959 = vpop.permute.xlu0 %958
        %960 = vrot.lane.b32.xlu0 %v948, 8
        %v961 = vpop.permute.xlu0 %960
        %962 = vrot.lane.b32.xlu0 %v949, 8
        %v963 = vpop.permute.xlu0 %962
        %964 = vrot.lane.b32.xlu0 %v950, 8
        %v965 = vpop.permute.xlu0 %964
        %966 = vrot.lane.b32.xlu0 %v951, 8
        %v967 = vpop.permute.xlu0 %966
        %v976 = vrot.slane %v928, 2
        %v977 = vrot.slane %v929, 2
        %v978 = vrot.slane %v930, 2
        %v979 = vrot.slane %v931, 2
        %v980 = vrot.slane %v932, 2
        %v981 = vrot.slane %v933, 2
        %v982 = vrot.slane %v934, 2
        %v983 = vrot.slane %v935, 2
        %984 = vrot.lane.b32.xlu0 %v976, 16
        %v985 = vpop.permute.xlu0 %984
        %986 = vrot.lane.b32.xlu0 %v977, 16
        %v987 = vpop.permute.xlu0 %986
        %988 = vrot.lane.b32.xlu0 %v978, 16
        %v989 = vpop.permute.xlu0 %988
        %990 = vrot.lane.b32.xlu0 %v979, 16
        %v991 = vpop.permute.xlu0 %990
        %992 = vrot.lane.b32.xlu0 %v980, 16
        %v993 = vpop.permute.xlu0 %992
        %994 = vrot.lane.b32.xlu0 %v981, 16
        %v995 = vpop.permute.xlu0 %994
        %996 = vrot.lane.b32.xlu0 %v982, 16
        %v997 = vpop.permute.xlu0 %996
        %998 = vrot.lane.b32.xlu0 %v983, 16
        %v999 = vpop.permute.xlu0 %998
        %v1008 = vrot.slane %v928, 3
        %v1009 = vrot.slane %v929, 3
        %v1010 = vrot.slane %v930, 3
        %v1011 = vrot.slane %v931, 3
        %v1012 = vrot.slane %v932, 3
        %v1013 = vrot.slane %v933, 3
        %v1014 = vrot.slane %v934, 3
        %v1015 = vrot.slane %v935, 3
        %1016 = vrot.lane.b32.xlu0 %v1008, 24
        %v1017 = vpop.permute.xlu0 %1016
        %1018 = vrot.lane.b32.xlu0 %v1009, 24
        %v1019 = vpop.permute.xlu0 %1018
        %1020 = vrot.lane.b32.xlu0 %v1010, 24
        %v1021 = vpop.permute.xlu0 %1020
        %1022 = vrot.lane.b32.xlu0 %v1011, 24
        %v1023 = vpop.permute.xlu0 %1022
        %1024 = vrot.lane.b32.xlu0 %v1012, 24
        %v1025 = vpop.permute.xlu0 %1024
        %1026 = vrot.lane.b32.xlu0 %v1013, 24
        %v1027 = vpop.permute.xlu0 %1026
        %1028 = vrot.lane.b32.xlu0 %v1014, 24
        %v1029 = vpop.permute.xlu0 %1028
        %1030 = vrot.lane.b32.xlu0 %v1015, 24
        %v1031 = vpop.permute.xlu0 %1030
        %v1040 = vsel %vm194, %v928, %v953
        %v1041 = vsel %vm194, %v929, %v955
        %v1042 = vsel %vm194, %v930, %v957
        %v1043 = vsel %vm194, %v931, %v959
        %v1044 = vsel %vm194, %v932, %v961
        %v1045 = vsel %vm194, %v933, %v963
        %v1046 = vsel %vm194, %v934, %v965
        %v1047 = vsel %vm194, %v935, %v967
        %vm1048 = vcmask 130048
        %v1049 = vsel %vm1048, %v1040, %v985
        %v1050 = vsel %vm1048, %v1041, %v987
        %v1051 = vsel %vm1048, %v1042, %v989
        %v1052 = vsel %vm1048, %v1043, %v991
        %v1053 = vsel %vm1048, %v1044, %v993
        %v1054 = vsel %vm1048, %v1045, %v995
        %v1055 = vsel %vm1048, %v1046, %v997
        %v1056 = vsel %vm1048, %v1047, %v999
        %vm1057 = vcmask 195584
        %v1058 = vsel %vm1057, %v1049, %v1017
        %v1059 = vsel %vm1057, %v1050, %v1019
        %v1060 = vsel %vm1057, %v1051, %v1021
        %v1061 = vsel %vm1057, %v1052, %v1023
        %v1062 = vsel %vm1057, %v1053, %v1025
        %v1063 = vsel %vm1057, %v1054, %v1027
        %v1064 = vsel %vm1057, %v1055, %v1029
        %v1065 = vsel %vm1057, %v1056, %v1031
        %vm1066 = vcmp.gt.f32.partialorder %v1058, 0.0
        %vm1067 = vcmp.gt.f32.partialorder %v1059, 0.0
        %vm1068 = vcmp.gt.f32.partialorder %v1060, 0.0
        %vm1069 = vcmp.gt.f32.partialorder %v1061, 0.0
        %vm1070 = vcmp.gt.f32.partialorder %v1062, 0.0
        %vm1071 = vcmp.gt.f32.partialorder %v1063, 0.0
        %vm1072 = vcmp.gt.f32.partialorder %v1064, 0.0
        %vm1073 = vcmp.gt.f32.partialorder %v1065, 0.0
        %v1074 = vmin.f32 %v1058, 0.0
        %v1075 = vmin.f32 %v1059, 0.0
        %v1076 = vmin.f32 %v1060, 0.0
        %v1077 = vmin.f32 %v1061, 0.0
        %v1078 = vmin.f32 %v1062, 0.0
        %v1079 = vmin.f32 %v1063, 0.0
        %v1080 = vmin.f32 %v1064, 0.0
        %v1081 = vmin.f32 %v1065, 0.0
        %v1082 = vmul.f32 %v1074, 1.442695
        %v1083 = vpow.pop %v1082
        %v1084 = vmul.f32 %v1075, 1.442695
        %v1085 = vpow.pop %v1084
        %v1086 = vmul.f32 %v1076, 1.442695
        %v1087 = vpow.pop %v1086
        %v1088 = vmul.f32 %v1077, 1.442695
        %v1089 = vpow.pop %v1088
        %v1090 = vmul.f32 %v1078, 1.442695
        %v1091 = vpow.pop %v1090
        %v1092 = vmul.f32 %v1079, 1.442695
        %v1093 = vpow.pop %v1092
        %v1094 = vmul.f32 %v1080, 1.442695
        %v1095 = vpow.pop %v1094
        %v1096 = vmul.f32 %v1081, 1.442695
        %v1097 = vpow.pop %v1096
        %v1098 = vsub.f32 %v1083, 1.0
        %v1099 = vsub.f32 %v1085, 1.0
        %v1100 = vsub.f32 %v1087, 1.0
        %v1101 = vsub.f32 %v1089, 1.0
        %v1102 = vsub.f32 %v1091, 1.0
        %v1103 = vsub.f32 %v1093, 1.0
        %v1104 = vsub.f32 %v1095, 1.0
        %v1105 = vsub.f32 %v1097, 1.0
        %v1106 = vsel %vm1066, %v1058, %v1098
        %v1107 = vsel %vm1067, %v1059, %v1099
        %v1108 = vsel %vm1068, %v1060, %v1100
        %v1109 = vsel %vm1069, %v1061, %v1101
        %v1110 = vsel %vm1070, %v1062, %v1102
        %v1111 = vsel %vm1071, %v1063, %v1103
        %v1112 = vsel %vm1072, %v1064, %v1104
        %v1113 = vsel %vm1073, %v1065, %v1105
        %v1122 = vrot.slane %v1107, 7
        %v1123 = vsel %vm466, %v1122, %v1106
        %v1124 = vrot.slane %v1108, 6
        %v1125 = vsel %vm467, %v1124, %v1123
        %v1126 = vrot.slane %v1109, 5
        %v1127 = vsel %vm469, %v1126, %v1125
        %v1128 = vrot.slane %v1110, 4
        %vm1129 = vcmask 1044484
        %v1130 = vsel %vm1129, %v1128, %v1127
        %v1131 = vrot.slane %v1111, 3
        %vm1132 = vcmask 1045509
        %v1133 = vsel %vm1132, %v1131, %v1130
        %v1134 = vrot.slane %v1112, 2
        %vm1135 = vcmask 1046534
        %v1136 = vsel %vm1135, %v1134, %v1133
        %v1137 = vrot.slane %v1113, 1
        %vm1138 = vcmask 1047559
        %v1139 = vsel %vm1138, %v1137, %v1136
        %vm1141 = vcmask 261120
        %1142 = vst.msk [vmem:[%s178] sm:$0xff] %vm1141, %v1139
        %s1143 = sand.u32 %s98, 1
        %s1144 = scalar_lea.sflag [#allocation3], %s1143
        %s1145 = sand.u32 %s98, 1
        %s1146 = smul.addr %s1145, 8
        %s1147 = scalar_lea.vmem [#allocation2], %s1146
        // Predicated region
        $region33: #{tpu_custom_call.1} parent=31 // pred_check
          %p1148 = pneg %p108
        $region34: #{tpu_custom_call.1} parent=31 // pred_check_branch
          %1150 = sbr.rel (%p1148) target = $region36
        $region35: #{tpu_custom_call.1} parent=31 // pred_region
          %s1152 = ssub.s32 128, 128
          %1153 = vsyncadd %s1144, %s1152
          %s1154 = smul.addr %s17, 128
          %s1155 = scalar_lea.hbm %s3, %s1154
          %s1157 = sshll.u32 %s1147, 4
          %s1158 = int_to_ptr.vmem [resolvable:$true] %s1157
          %1160 = dma.vmem_to_hbm [thread:$0]  %s1158, 128, %s1155, %s1144
        $region36: #{tpu_custom_call.1} parent=31 // pred_fallthru
          _
      $region32: #{tpu_custom_call.1} parent=5 // pred_fallthru
        _
      %p1161 = scmp.le.s32.totalorder 2, %s12
      // Predicated region
      $region37: #{tpu_custom_call.1} parent=5 // pred_check
        %p1162 = pneg %p1161
      $region38: #{tpu_custom_call.1} parent=5 // pred_check_branch
        %1164 = sbr.rel (%p1162) target = $region40
      $region39: #{tpu_custom_call.1} parent=5 // pred_region
        %s1165 = ssub.s32 %s12, 2
        // Predicated region
        $region41: #{tpu_custom_call.1} parent=39 // pred_check
          %p1166 = pneg %p114
        $region42: #{tpu_custom_call.1} parent=39 // pred_check_branch
          %1168 = sbr.rel (%p1166) target = $region44
        $region43: #{tpu_custom_call.1} parent=39 // pred_region
          %s1169 = sand.u32 %s99, 1
          %s1170 = scalar_lea.sflag [#allocation3], %s1169
          %s1171 = sand.u32 %s99, 1
          %s1172 = smul.addr %s1171, 8
          %s1173 = scalar_lea.vmem [#allocation2], %s1172
          %1174 = dma.done %s1170, 128
        $region44: #{tpu_custom_call.1} parent=39 // pred_fallthru
          _
      $region40: #{tpu_custom_call.1} parent=5 // pred_fallthru
        _
    $region6: #{tpu_custom_call.1} parent=1 // loop_footer
      %s16 = sadd.s32 1, %s12
    $region7: #{tpu_custom_call.1} parent=1 // loop_footer_branch
      %11 = sbr.rel target = $region3
    $region8: #{tpu_custom_call.1} parent=1 // loop_exit
      _
    %1175 = vsyncpa [#allocation3], 1
    %s1176 = scalar_lea.sflag [#allocation3], 1
    %1177 = vsyncpa %s1176, 1

</llo_original>
